<compile_context>
chip_gen: v7x
topology: tpu7x:2x2x1
jax: 0.10.0
libtpu: 0.0.40
codegen_flags: <defaults>
</compile_context>

<pallas_src>
import jax
import jax.numpy as jnp
from jax.experimental import pallas as pl
from jax.experimental.pallas import tpu as pltpu


_NEG_BIG = -1e30  # bias of padded class columns -> exp underflows to exactly 0


def _round_up(n, m):
    return ((n + m - 1) // m) * m


# --------------------------------------------------------------------------- #
# Kernel
# --------------------------------------------------------------------------- #
def _classifier_kernel(x_ref, w1_ref, b1_ref, w2_ref, b2_ref, wo_ref, bo_ref, o_ref):
    """Fused (BN_in+Linear1+BN1) -> ReLU -> (Linear2+BN2) -> ReLU -> Linear_out -> softmax.

    BatchNorms are pre-folded into the weights/biases. Matmuls are bf16 on the
    MXU with f32 accumulation; bias/ReLU/softmax in f32; output stored bf16.
    """
    # In-kernel cast avoids a standalone XLA cast pass over the whole input.
    x = x_ref[...].astype(jnp.bfloat16)                           # (TILE_B, D_in)

    h1 = jnp.dot(x, w1_ref[...], preferred_element_type=jnp.float32) + b1_ref[...]
    h1 = jnp.maximum(h1, 0.0).astype(jnp.bfloat16)                # Dropout in eval == identity

    h2 = jnp.dot(h1, w2_ref[...], preferred_element_type=jnp.float32) + b2_ref[...]
    h2 = jnp.maximum(h2, 0.0).astype(jnp.bfloat16)

    logits = jnp.dot(h2, wo_ref[...], preferred_element_type=jnp.float32) + bo_ref[...]

    # Numerically stable softmax over the (lane-dense, 128-padded) class axis.
    m = jnp.max(logits, axis=-1, keepdims=True)
    e = jnp.exp(logits - m)
    denom = jnp.sum(e, axis=-1, keepdims=True)
    # approx=True lowers to the EUP vrcp slot -> nearly free under a memory-bound loop.
    o_ref[...] = (e * pl.reciprocal(denom, approx=True)).astype(o_ref.dtype)


# --------------------------------------------------------------------------- #
# Parameter folding / padding (one-time prep — call at model-load time)
# --------------------------------------------------------------------------- #
def prepare_params(params, eps=1e-5):
    """Fold BN_in/BN1/BN2 into the Linear layers, pad to lane-dense dims, cast to bf16.

    Returns ((w1, b1, w2, b2, wo, bo), num_classes) ready for the kernel.
    Call this ONCE at model load; do not re-fold per forward call.
    """
    def bn_scale_shift(g, b, m, v):
        s = g * jax.lax.rsqrt(v + eps)
        return s, b - m * s

    s_in, sh_in = bn_scale_shift(params["g_in"], params["b_in"], params["m_in"], params["v_in"])
    s1, sh1 = bn_scale_shift(params["g1"], params["be1"], params["m1"], params["v1"])
    s2, sh2 = bn_scale_shift(params["g2"], params["be2"], params["m2"], params["v2"])

    w1, bb1 = params["w1"], params["bb1"]
    w2, bb2 = params["w2"], params["bb2"]
    wo, bo = params["wo"], params["bo"]

    # BN_in folded into linear1's input side, BN1 folded into its output side:
    #   BN1(BN_in(x) @ w1 + bb1) = x @ (s_in[:,None]*w1*s1) + ((sh_in@w1 + bb1)*s1 + sh1)
    w1_eff = (s_in.reshape(-1, 1) * w1) * s1            # (D_in, H1)
    b1_eff = (sh_in @ w1 + bb1) * s1 + sh1              # (1, H1)
    # BN2 folded into linear2's output side.
    w2_eff = w2 * s2                                    # (H1, H2)
    b2_eff = bb2 * s2 + sh2                             # (1, H2)
    wo_eff, bo_eff = wo, bo                             # (H2, C), (1, C)

    D_in, H1 = w1_eff.shape
    H2 = w2_eff.shape[1]
    C = wo_eff.shape[1]
    H1p, H2p, Cp = _round_up(H1, 128), _round_up(H2, 128), _round_up(C, 128)

    # Zero-pad hidden dims (ReLU(0)=0 flows through zero weight rows -> exact).
    # D_in stays UNPADDED: padding the contraction dim would only multiply x HBM
    # traffic on a memory-bound kernel.
    w1p = jnp.zeros((D_in, H1p), jnp.float32).at[:, :H1].set(w1_eff)
    b1p = jnp.zeros((1, H1p), jnp.float32).at[:, :H1].set(b1_eff)
    w2p = jnp.zeros((H1p, H2p), jnp.float32).at[:H1, :H2].set(w2_eff)
    b2p = jnp.zeros((1, H2p), jnp.float32).at[:, :H2].set(b2_eff)
    wop = jnp.zeros((H2p, Cp), jnp.float32).at[:H2, :C].set(wo_eff)
    # Padded class columns get a huge negative bias -> softmax prob exactly 0.
    bop = jnp.full((1, Cp), _NEG_BIG, jnp.float32).at[:, :C].set(bo_eff)

    folded = (w1p.astype(jnp.bfloat16), b1p,
              w2p.astype(jnp.bfloat16), b2p,
              wop.astype(jnp.bfloat16), bop)
    return folded, C


# --------------------------------------------------------------------------- #
# Wrapper (takes pre-folded params)
# --------------------------------------------------------------------------- #
def model_classifier_apply(x, folded, num_classes, *, tile_b=4096):
    """Run the fused classifier kernel with pre-folded params.

    x: (B, input_dim) or (input_dim,). Returns (B, num_classes) bf16 probabilities.
    """
    if x.ndim == 1:                      # PyTorch: unsqueeze(0) for 1-D input
        x = x[None, :]

    w1, b1, w2, b2, wo, bo = folded
    B, D_in = x.shape
    H1p, H2p, Cp = w1.shape[1], w2.shape[1], wo.shape[1]

    # --- batch tiling (no batch-pad copy: Pallas handles a partial last block) ---
    b8 = _round_up(B, 8)
    tile_b = max(8, min(tile_b, b8))
    # v7x has 2 TensorCores: keep >=2 grid blocks when there is enough work.
    if b8 >= 2 * 1024:
        tile_b = min(tile_b, _round_up(-(-b8 // 2), 8))

    # --- VMEM budget guard (weights resident + double-buffered x/out + acts) ---
    weight_bytes = 2 * (w1.size + w2.size + wo.size) + 4 * (b1.size + b2.size + bo.size)

    def _tile_bytes(tb):
        stream = 2 * (tb * D_in * x.dtype.itemsize + tb * Cp * 2)  # double-buffered in/out
        acts = tb * (H1p + H2p) * 2 + tb * Cp * 4                  # rough intermediates
        return stream + acts

    vmem_cap = 48 * 1024 * 1024  # headroom under v7x's 64 MiB physical VMEM
    while tile_b > 8 and weight_bytes + _tile_bytes(tile_b) > vmem_cap:
        tile_b = max(8, _round_up(tile_b // 2, 8))
    if weight_bytes + _tile_bytes(tile_b) > vmem_cap:
        # TODO(synk): switch w2/wo to K-tiled BlockSpecs when hidden dims outgrow VMEM.
        raise ValueError("Folded weights too large to keep VMEM-resident on v7x; "
                         "K-tile the weight BlockSpecs.")

    vmem_limit = min(64 * 1024 * 1024,
                     max(32 * 1024 * 1024,
                         int(1.5 * (weight_bytes + _tile_bytes(tile_b)))))

    grid = (pl.cdiv(B, tile_b),)

    out = pl.pallas_call(
        _classifier_kernel,
        out_shape=jax.ShapeDtypeStruct((B, Cp), jnp.bfloat16),   # bf16: halves HBM writeback
        grid=grid,
        in_specs=[
            pl.BlockSpec((tile_b, D_in), lambda i: (i, 0)),   # streamed batch tiles (native dtype)
            pl.BlockSpec((D_in, H1p), lambda i: (0, 0)),      # VMEM-resident weights
            pl.BlockSpec((1, H1p), lambda i: (0, 0)),
            pl.BlockSpec((H1p, H2p), lambda i: (0, 0)),
            pl.BlockSpec((1, H2p), lambda i: (0, 0)),
            pl.BlockSpec((H2p, Cp), lambda i: (0, 0)),
            pl.BlockSpec((1, Cp), lambda i: (0, 0)),
        ],
        out_specs=pl.BlockSpec((tile_b, Cp), lambda i: (i, 0)),  # 128-lane-dense store
        compiler_params=pltpu.CompilerParams(
            dimension_semantics=("parallel",),        # shard batch tiles across TCs (v7x)
            vmem_limit_bytes=vmem_limit,
        ),
    )(x, w1, b1, w2, b2, wo, bo)

    # Slice off class padding. bf16 halves this copy; under jit it fuses with the
    # consumer. Callers that can consume the padded block should skip the slice.
    return out[:, :num_classes]


def model_classifier_forward(x, params, *, eps=1e-5, tile_b=4096):
    """Convenience wrapper: fold params then apply. Prefer prepare_params() once
    at model-load time + model_classifier_apply() in the hot path."""
    folded, num_classes = prepare_params(params, eps)
    return model_classifier_apply(x, folded, num_classes, tile_b=tile_b)


# --------------------------------------------------------------------------- #
# References (for correctness checks)
# --------------------------------------------------------------------------- #
def reference_forward_f32(x, p, eps=1e-5):
    """Full-precision, unfolded reference matching the PyTorch module in eval mode."""
    def bn(h, g, b, m, v):
        return (h - m) / jnp.sqrt(v + eps) * g + b
    h = bn(x, p["g_in"], p["b_in"], p["m_in"], p["v_in"])
    h = jnp.maximum(bn(h @ p["w1"] + p["bb1"], p["g1"], p["be1"], p["m1"], p["v1"]), 0.0)
    h = jnp.maximum(bn(h @ p["w2"] + p["bb2"], p["g2"], p["be2"], p["m2"], p["v2"]), 0.0)
    return jax.nn.softmax(h @ p["wo"] + p["bo"], axis=-1)


def reference_forward_matched(x, params, eps=1e-5):
    """Plain-JAX reference using the same folded/padded bf16 weights as the kernel."""
    (w1, b1, w2, b2, wo, bo), C = prepare_params(params, eps)
    xb = x.astype(jnp.bfloat16)
    h1 = jnp.maximum(jnp.dot(xb, w1, preferred_element_type=jnp.float32) + b1, 0.0)
    h1 = h1.astype(jnp.bfloat16)
    h2 = jnp.maximum(jnp.dot(h1, w2, preferred_element_type=jnp.float32) + b2, 0.0)
    h2 = h2.astype(jnp.bfloat16)
    logits = jnp.dot(h2, wo, preferred_element_type=jnp.float32) + bo
    return jax.nn.softmax(logits, axis=-1)[:, :C]


# --------------------------------------------------------------------------- #
# Params / test harness
# --------------------------------------------------------------------------- #
def init_params(key, input_dim, first_dim, second_dim, num_cell_types):
    """Init mirroring PyTorch defaults (Linear: U(-1/sqrt(fan_in),...); BatchNorm1d
    affine/running stats perturbed so the normalization path is non-trivial)."""
    ks = jax.random.split(key, 15)

    def linear(kw, kb, fan_in, fan_out):
        bound = 1.0 / jnp.sqrt(fan_in)
        w = jax.random.uniform(kw, (fan_in, fan_out), jnp.float32, -bound, bound)
        b = jax.random.uniform(kb, (1, fan_out), jnp.float32, -bound, bound)
        return w, b

    def bn(kg, kb, km, dim):
        gamma = 1.0 + 0.1 * jax.random.normal(kg, (1, dim), jnp.float32)
        beta = 0.1 * jax.random.normal(kb, (1, dim), jnp.float32)
        mean = 0.1 * jax.random.normal(km, (1, dim), jnp.float32)
        var = jnp.ones((1, dim), jnp.float32) * 1.5
        return gamma, beta, mean, var

    w1, bb1 = linear(ks[0], ks[1], input_dim, first_dim)
    w2, bb2 = linear(ks[2], ks[3], first_dim, second_dim)
    wo, bo = linear(ks[4], ks[5], second_dim, num_cell_types)

    g_in, b_in, m_in, v_in = bn(ks[6], ks[7], ks[8], input_dim)
    g1, be1, m1, v1 = bn(ks[9], ks[10], ks[11], first_dim)
    g2, be2, m2, v2 = bn(ks[12], ks[13], ks[14], second_dim)

    return dict(
        g_in=g_in, b_in=b_in, m_in=m_in, v_in=v_in,
        w1=w1, bb1=bb1, g1=g1, be1=be1, m1=m1, v1=v1,
        w2=w2, bb2=bb2, g2=g2, be2=be2, m2=m2, v2=v2,
        wo=wo, bo=bo,
    )


if __name__ == "__main__":
    # Small shapes consistent with the module: batch=8 cells, input_dim=32 HVGs,
    # first_layer_dim=64, second_layer_dim=64, num_cell_types=16.
    key = jax.random.PRNGKey(0)
    k_x, k_p = jax.random.split(key)

    B, INPUT_DIM, H1, H2, NUM_CELL_TYPES = 8, 32, 64, 64, 16

    # log1p-normalized-counts-like input (non-negative).
    x = jnp.log1p(jnp.abs(jax.random.normal(k_x, (B, INPUT_DIM), jnp.float32)) * 3.0)
    params = init_params(k_p, INPUT_DIM, H1, H2, NUM_CELL_TYPES)

    # Fold/pad/cast ONCE (model-load time), then run the kernel in the hot path.
    folded, num_classes = prepare_params(params)
    fwd = jax.jit(lambda xx: model_classifier_apply(xx, folded, num_classes))

    out = fwd(x)
    out = jax.block_until_ready(out)

    assert out.shape == (B, NUM_CELL_TYPES), out.shape
    out_f32 = out.astype(jnp.float32)
    # Padded classes carry exactly 0 probability; real classes sum to 1 (bf16 rounding).
    assert jnp.allclose(jnp.sum(out_f32, axis=-1), 1.0, atol=1e-2)
    # Numerically matched (folded + bf16) reference: tolerance covers bf16 output rounding.
    ref_matched = reference_forward_matched(x, params)
    assert jnp.allclose(out_f32, ref_matched, atol=1e-2), jnp.max(jnp.abs(out_f32 - ref_matched))
    # Full-precision unfolded reference: looser tolerance (bf16 weight/output rounding).
    ref_f32 = reference_forward_f32(x, params)
    assert jnp.allclose(out_f32, ref_f32, atol=3e-2), jnp.max(jnp.abs(out_f32 - ref_f32))

    print("KERNEL_OK")
</pallas_src>

<mosaic_0001>
module attributes {stable_mosaic.version = 11 : i64} {
  func.func @_classifier_kernel(%arg0: i32, %arg1: memref<8x32xf32, #tpu.memory_space<vmem>>, %arg2: memref<32x128xbf16, #tpu.memory_space<vmem>>, %arg3: memref<1x128xf32, #tpu.memory_space<vmem>>, %arg4: memref<128x128xbf16, #tpu.memory_space<vmem>>, %arg5: memref<1x128xf32, #tpu.memory_space<vmem>>, %arg6: memref<128x128xbf16, #tpu.memory_space<vmem>>, %arg7: memref<1x128xf32, #tpu.memory_space<vmem>>, %arg8: memref<8x128xbf16, #tpu.memory_space<vmem>>) attributes {dimension_semantics = [#tpu.dimension_semantics<parallel>], iteration_bounds = array<i64: 1>, scalar_prefetch = 0 : i64, scratch_operands = 0 : i64, tpu.core_type = #tpu.core_type<tc>, window_params = [{transform_indices = @transform_0, window_bounds = array<i64: 8, 32>}, {pipeline_mode = #tpu.pipeline_mode<synchronous>, transform_indices = @transform_1, window_bounds = array<i64: 32, 128>}, {pipeline_mode = #tpu.pipeline_mode<synchronous>, transform_indices = @transform_2, window_bounds = array<i64: 1, 128>}, {pipeline_mode = #tpu.pipeline_mode<synchronous>, transform_indices = @transform_3, window_bounds = array<i64: 128, 128>}, {pipeline_mode = #tpu.pipeline_mode<synchronous>, transform_indices = @transform_4, window_bounds = array<i64: 1, 128>}, {pipeline_mode = #tpu.pipeline_mode<synchronous>, transform_indices = @transform_5, window_bounds = array<i64: 128, 128>}, {pipeline_mode = #tpu.pipeline_mode<synchronous>, transform_indices = @transform_6, window_bounds = array<i64: 1, 128>}, {transform_indices = @transform_7, window_bounds = array<i64: 8, 128>}]} {
    %c0 = arith.constant 0 : index
    %c0_0 = arith.constant 0 : index
    %0 = vector.load %arg1[%c0, %c0_0] : memref<8x32xf32, #tpu.memory_space<vmem>>, vector<8x32xf32>
    %1 = arith.truncf %0 : vector<8x32xf32> to vector<8x32xbf16>
    %c0_1 = arith.constant 0 : index
    %c0_2 = arith.constant 0 : index
    %2 = vector.load %arg2[%c0_1, %c0_2] : memref<32x128xbf16, #tpu.memory_space<vmem>>, vector<32x128xbf16>
    %cst = arith.constant dense<0.000000e+00> : vector<8x128xf32>
    %3 = tpu.matmul %1, %2, %cst {dimension_numbers = #tpu.dot_dimension_numbers<[1], [0], [0], [1], [0, 0, 1, 1], [], []>} : vector<8x32xbf16>, vector<32x128xbf16>, vector<8x128xf32> -> vector<8x128xf32>
    %c0_3 = arith.constant 0 : index
    %c0_4 = arith.constant 0 : index
    %4 = vector.load %arg3[%c0_3, %c0_4] : memref<1x128xf32, #tpu.memory_space<vmem>>, vector<1x128xf32>
    %5 = vector.broadcast %4 : vector<1x128xf32> to vector<8x128xf32>
    %6 = arith.addf %3, %5 : vector<8x128xf32>
    %cst_5 = arith.constant 0.000000e+00 : f32
    %7 = vector.broadcast %cst_5 : f32 to vector<8x128xf32>
    %8 = arith.maximumf %6, %7 : vector<8x128xf32>
    %9 = arith.truncf %8 : vector<8x128xf32> to vector<8x128xbf16>
    %c0_6 = arith.constant 0 : index
    %c0_7 = arith.constant 0 : index
    %10 = vector.load %arg4[%c0_6, %c0_7] : memref<128x128xbf16, #tpu.memory_space<vmem>>, vector<128x128xbf16>
    %cst_8 = arith.constant dense<0.000000e+00> : vector<8x128xf32>
    %11 = tpu.matmul %9, %10, %cst_8 {dimension_numbers = #tpu.dot_dimension_numbers<[1], [0], [0], [1], [0, 0, 1, 1], [], []>} : vector<8x128xbf16>, vector<128x128xbf16>, vector<8x128xf32> -> vector<8x128xf32>
    %c0_9 = arith.constant 0 : index
    %c0_10 = arith.constant 0 : index
    %12 = vector.load %arg5[%c0_9, %c0_10] : memref<1x128xf32, #tpu.memory_space<vmem>>, vector<1x128xf32>
    %13 = vector.broadcast %12 : vector<1x128xf32> to vector<8x128xf32>
    %14 = arith.addf %11, %13 : vector<8x128xf32>
    %cst_11 = arith.constant 0.000000e+00 : f32
    %15 = vector.broadcast %cst_11 : f32 to vector<8x128xf32>
    %16 = arith.maximumf %14, %15 : vector<8x128xf32>
    %17 = arith.truncf %16 : vector<8x128xf32> to vector<8x128xbf16>
    %c0_12 = arith.constant 0 : index
    %c0_13 = arith.constant 0 : index
    %18 = vector.load %arg6[%c0_12, %c0_13] : memref<128x128xbf16, #tpu.memory_space<vmem>>, vector<128x128xbf16>
    %cst_14 = arith.constant dense<0.000000e+00> : vector<8x128xf32>
    %19 = tpu.matmul %17, %18, %cst_14 {dimension_numbers = #tpu.dot_dimension_numbers<[1], [0], [0], [1], [0, 0, 1, 1], [], []>} : vector<8x128xbf16>, vector<128x128xbf16>, vector<8x128xf32> -> vector<8x128xf32>
    %c0_15 = arith.constant 0 : index
    %c0_16 = arith.constant 0 : index
    %20 = vector.load %arg7[%c0_15, %c0_16] : memref<1x128xf32, #tpu.memory_space<vmem>>, vector<1x128xf32>
    %21 = vector.broadcast %20 : vector<1x128xf32> to vector<8x128xf32>
    %22 = arith.addf %19, %21 : vector<8x128xf32>
    %cst_17 = arith.constant dense<0xFF800000> : vector<8xf32>
    %23 = vector.multi_reduction <maximumf>, %22, %cst_17 [1] : vector<8x128xf32> to vector<8xf32>
    %24 = vector.shape_cast %23 : vector<8xf32> to vector<8x1xf32>
    %25 = vector.broadcast %24 : vector<8x1xf32> to vector<8x128xf32>
    %26 = arith.subf %22, %25 : vector<8x128xf32>
    %27 = math.exp %26 : vector<8x128xf32>
    %cst_18 = arith.constant dense<0.000000e+00> : vector<8xf32>
    %28 = vector.multi_reduction <add>, %27, %cst_18 [1] : vector<8x128xf32> to vector<8xf32>
    %29 = vector.shape_cast %28 : vector<8xf32> to vector<8x1xf32>
    %30 = tpu.reciprocal %29 {approx = true} : vector<8x1xf32> -> vector<8x1xf32>
    %31 = vector.broadcast %30 : vector<8x1xf32> to vector<8x128xf32>
    %32 = arith.mulf %27, %31 : vector<8x128xf32>
    %33 = arith.truncf %32 : vector<8x128xf32> to vector<8x128xbf16>
    %c0_19 = arith.constant 0 : index
    %c0_20 = arith.constant 0 : index
    %34 = vector.load %arg8[%c0_19, %c0_20] : memref<8x128xbf16, #tpu.memory_space<vmem>>, vector<8x128xbf16>
    tpu.vector_store %arg8[%c0_19, %c0_20], %33 {strides = array<i32>} : memref<8x128xbf16, #tpu.memory_space<vmem>>, vector<8x128xbf16>,
    return
  }
  func.func @transform_0(%arg0: i32) -> (i32, i32) {
    %c0_i32 = arith.constant 0 : i32
    %c0_i32_0 = arith.constant 0 : i32
    return %arg0, %c0_i32 : i32, i32
  }
  func.func @transform_1(%arg0: i32) -> (i32, i32) {
    %c0_i32 = arith.constant 0 : i32
    %c0_i32_0 = arith.constant 0 : i32
    %c0_i32_1 = arith.constant 0 : i32
    return %c0_i32, %c0_i32_0 : i32, i32
  }
  func.func @transform_2(%arg0: i32) -> (i32, i32) {
    %c0_i32 = arith.constant 0 : i32
    %c0_i32_0 = arith.constant 0 : i32
    %c0_i32_1 = arith.constant 0 : i32
    return %c0_i32, %c0_i32_0 : i32, i32
  }
  func.func @transform_3(%arg0: i32) -> (i32, i32) {
    %c0_i32 = arith.constant 0 : i32
    %c0_i32_0 = arith.constant 0 : i32
    %c0_i32_1 = arith.constant 0 : i32
    return %c0_i32, %c0_i32_0 : i32, i32
  }
  func.func @transform_4(%arg0: i32) -> (i32, i32) {
    %c0_i32 = arith.constant 0 : i32
    %c0_i32_0 = arith.constant 0 : i32
    %c0_i32_1 = arith.constant 0 : i32
    return %c0_i32, %c0_i32_0 : i32, i32
  }
  func.func @transform_5(%arg0: i32) -> (i32, i32) {
    %c0_i32 = arith.constant 0 : i32
    %c0_i32_0 = arith.constant 0 : i32
    %c0_i32_1 = arith.constant 0 : i32
    return %c0_i32, %c0_i32_0 : i32, i32
  }
  func.func @transform_6(%arg0: i32) -> (i32, i32) {
    %c0_i32 = arith.constant 0 : i32
    %c0_i32_0 = arith.constant 0 : i32
    %c0_i32_1 = arith.constant 0 : i32
    return %c0_i32, %c0_i32_0 : i32, i32
  }
  func.func @transform_7(%arg0: i32) -> (i32, i32) {
    %c0_i32 = arith.constant 0 : i32
    %c0_i32_0 = arith.constant 0 : i32
    return %arg0, %c0_i32 : i32, i32
  }
}

</mosaic_0001>

<llo_original>
// kernel: _lambda_.1
$region0: #{_lambda_.1}
  #allocation0 [shape = 'u32[]', space=smem, size = 0x4, offset = 0x4, fixed_abs, tag = 'smem constant byte address 0x4 - core index']
  #allocation1 [shape = 'u32[144,128]{1,0:T(1,128)}', space=vmem, size = 0x12000, scoped, tag = 'internal scratch']
  %s0 = inlined_call_operand.vmem [shape: f32[8,32], index: 0, kind: input, shape index: {}]
  %s1 = inlined_call_operand.vmem [shape: bf16[32,128], index: 1, kind: input, shape index: {}]
  %s2 = inlined_call_operand.hbm [shape: f32[1,128], index: 2, kind: input, shape index: {}]
  %s3 = inlined_call_operand.hbm [shape: bf16[128,128], index: 3, kind: input, shape index: {}]
  %s4 = inlined_call_operand.vmem [shape: f32[1,128], index: 4, kind: input, shape index: {}]
  %s5 = inlined_call_operand.hbm [shape: bf16[128,128], index: 5, kind: input, shape index: {}]
  %s6 = inlined_call_operand.vmem [shape: f32[1,128], index: 6, kind: input, shape index: {}]
  %s7 = inlined_call_operand.hbm [shape: bf16[8,128], index: 7, kind: output, shape index: {}]
  %s8 = sld [smem:[#allocation0]]
  $region50: #{_lambda_.1} parent=0
    _
  %s10 = ssub.s32 1, %s8
  %s11 = scalar_select 0, %s10, %s8
  $region1: #{_lambda_.1} parent=0
    #allocation2 [shape = 'u8[512]{0}', space=vmem, size = 0x400, scoped, tag = 'input window, operand 2, single buffered']
    #allocation3 [shape = 's32[1]{0}', space=sflag, size = 0x4, scoped, tag = 'scoped memory for _lambda_.1']
    #allocation4 [shape = 's32[1]{0}', space=sflag, size = 0x4, scoped, tag = 'scoped memory for _lambda_.1']
    #allocation5 [shape = 'u8[32768]{0}', space=vmem, size = 0x8000, scoped, tag = 'input window, operand 3, single buffered']
    #allocation6 [shape = 's32[1]{0}', space=sflag, size = 0x4, scoped, tag = 'scoped memory for _lambda_.1']
    #allocation7 [shape = 'u8[32768]{0}', space=vmem, size = 0x8000, scoped, tag = 'input window, operand 5, single buffered']
    #allocation8 [shape = 'u8[2048]{0}', space=vmem, size = 0x800, scoped, tag = 'output window, operand 0, single buffered']
    %12 = vsyncpa [#allocation3], 0
    %13 = vsyncpa [#allocation6], 0
    %14 = vsyncpa [#allocation4], 0
    // Predicated region
    $region2: #{_lambda_.1} parent=1 // pred_check
      _
    $region3: #{_lambda_.1} parent=1 // pred_check_branch
      %16 = sbr.rel (0) target = $region5
    $region4: #{_lambda_.1} parent=1 // pred_region
      _
    $region5: #{_lambda_.1} parent=1 // pred_fallthru
      _
    // Predicated region
    $region6: #{_lambda_.1} parent=1 // pred_check
      _
    $region7: #{_lambda_.1} parent=1 // pred_check_branch
      %18 = sbr.rel (0) target = $region9
    $region8: #{_lambda_.1} parent=1 // pred_region
      _
    $region9: #{_lambda_.1} parent=1 // pred_fallthru
      _
    // Predicated region
    $region10: #{_lambda_.1} parent=1 // pred_check
      _
    $region11: #{_lambda_.1} parent=1 // pred_check_branch
      %20 = sbr.rel (0) target = $region13
    $region12: #{_lambda_.1} parent=1 // pred_region
      %s22 = ssub.s32 16, 16
      %23 = vsyncadd [#allocation3], %s22
      %s25 = sshll.u32 [#allocation2], 4
      %s26 = int_to_ptr.vmem [resolvable:$true] %s25
      %28 = dma.hbm_to_vmem [thread:$0]  %s2, 16, %s26, [#allocation3]
    $region13: #{_lambda_.1} parent=1 // pred_fallthru
      _
    // Predicated region
    $region14: #{_lambda_.1} parent=1 // pred_check
      _
    $region15: #{_lambda_.1} parent=1 // pred_check_branch
      %30 = sbr.rel (0) target = $region17
    $region16: #{_lambda_.1} parent=1 // pred_region
      %s32 = ssub.s32 1024, 1024
      %33 = vsyncadd [#allocation6], %s32
      %s34 = sshll.u32 [#allocation5], 4
      %s35 = int_to_ptr.vmem [resolvable:$true] %s34
      %40 = dma.hbm_to_vmem [thread:$0]  %s3, 1024, %s35, [#allocation6], 64, 64, 4
    $region17: #{_lambda_.1} parent=1 // pred_fallthru
      _
    // Predicated region
    $region18: #{_lambda_.1} parent=1 // pred_check
      _
    $region19: #{_lambda_.1} parent=1 // pred_check_branch
      %42 = sbr.rel (0) target = $region21
    $region20: #{_lambda_.1} parent=1 // pred_region
      _
    $region21: #{_lambda_.1} parent=1 // pred_fallthru
      _
    // Predicated region
    $region22: #{_lambda_.1} parent=1 // pred_check
      _
    $region23: #{_lambda_.1} parent=1 // pred_check_branch
      %44 = sbr.rel (0) target = $region25
    $region24: #{_lambda_.1} parent=1 // pred_region
      %s46 = ssub.s32 1024, 1024
      %47 = vsyncadd [#allocation6], %s46
      %s48 = sshll.u32 [#allocation7], 4
      %s49 = int_to_ptr.vmem [resolvable:$true] %s48
      %54 = dma.hbm_to_vmem [thread:$0]  %s5, 1024, %s49, [#allocation6], 64, 64, 4
    $region25: #{_lambda_.1} parent=1 // pred_fallthru
      _
    // Predicated region
    $region26: #{_lambda_.1} parent=1 // pred_check
      _
    $region27: #{_lambda_.1} parent=1 // pred_check_branch
      %56 = sbr.rel (0) target = $region29
    $region28: #{_lambda_.1} parent=1 // pred_region
      _
    $region29: #{_lambda_.1} parent=1 // pred_fallthru
      _
    // Predicated region
    $region30: #{_lambda_.1} parent=1 // pred_check
      _
    $region31: #{_lambda_.1} parent=1 // pred_check_branch
      %58 = sbr.rel (0) target = $region33
    $region32: #{_lambda_.1} parent=1 // pred_region
      %59 = dma.done [#allocation3], 16
    $region33: #{_lambda_.1} parent=1 // pred_fallthru
      _
    // Predicated region
    $region34: #{_lambda_.1} parent=1 // pred_check
      _
    $region35: #{_lambda_.1} parent=1 // pred_check_branch
      %61 = sbr.rel (0) target = $region37
    $region36: #{_lambda_.1} parent=1 // pred_region
      %62 = dma.done [#allocation6], 1024
    $region37: #{_lambda_.1} parent=1 // pred_fallthru
      _
    // Predicated region
    $region38: #{_lambda_.1} parent=1 // pred_check
      _
    $region39: #{_lambda_.1} parent=1 // pred_check_branch
      %64 = sbr.rel (0) target = $region41
    $region40: #{_lambda_.1} parent=1 // pred_region
      %65 = dma.done [#allocation6], 1024
    $region41: #{_lambda_.1} parent=1 // pred_fallthru
      _
    %v67 = vld [vmem:[%s0] sm:$0xff]
    %v68 = vpack.c.bf16 %v67, %v67
    %v69 = vld [vmem:[%s1] sm:$0xf]
    %v70 = vld [vmem:[%s1 + $0x4] sm:$0xf]
    %v71 = vld [vmem:[%s1 + $0x8] sm:$0xf]
    %v72 = vld [vmem:[%s1 + $0xc] sm:$0xf]
    %v73 = vld [vmem:[#allocation2] sm:$0x1]
    %v75 = vlaneseq
    %v76 = vshrl.u32 %v75, 7
    %v77 = vsub.s32 0, %v76
    %v78 = vrot.slane %v73, %v77
    %v84 = vunpack.c.l.b16 %v69
    %v85 = vunpack.c.l.b16 %v70
    %v86 = vunpack.c.l.b16 %v71
    %v87 = vunpack.c.l.b16 %v72
    %v88 = vpack.c.b16 %v85, %v84
    %v89 = vpack.c.b16 %v87, %v86
    %vm92 = vcmask 261120
    %v94 = vsel %vm92, %v68, 0
    %96 = vmatprep.subr.bf16.mxu0 0
    %97 = vmatpush1.bf16.msra.mxu0 %v88
    %98 = vmatprep.subr.bf16.mxu0 0
    %99 = vmatpush1.bf16.msra.mxu0 %v89
    %100 = vmatprep.subr.bf16.mxu0 0
    %101 = vmatpush1.bf16.msra.mxu0 0
    %102 = vmatprep.subr.bf16.mxu0 0
    %103 = vmatpush1.bf16.msra.mxu0 0
    %104 = vmatprep.subr.bf16.mxu0 0
    %105 = vmatpush1.bf16.msra.mxu0 0
    %106 = vmatprep.subr.bf16.mxu0 0
    %107 = vmatpush1.bf16.msra.mxu0 0
    %108 = vmatprep.subr.bf16.mxu0 0
    %109 = vmatpush1.bf16.msra.mxu0 0
    %110 = vmatprep.subr.bf16.mxu0 0
    %111 = vmatpush1.bf16.msra.mxu0 0
    %112 = vmatprep.subr.bf16.mxu0 0
    %113 = vmatpush1.bf16.msra.mxu0 0
    %114 = vmatprep.subr.bf16.mxu0 0
    %115 = vmatpush1.bf16.msra.mxu0 0
    %116 = vmatprep.subr.bf16.mxu0 0
    %117 = vmatpush1.bf16.msra.mxu0 0
    %118 = vmatprep.subr.bf16.mxu0 0
    %119 = vmatpush1.bf16.msra.mxu0 0
    %120 = vmatprep.subr.bf16.mxu0 0
    %121 = vmatpush1.bf16.msra.mxu0 0
    %122 = vmatprep.subr.bf16.mxu0 0
    %123 = vmatpush1.bf16.msra.mxu0 0
    %124 = vmatprep.subr.bf16.mxu0 0
    %125 = vmatpush1.bf16.msra.mxu0 0
    %126 = vmatprep.subr.bf16.mxu0 0
    %127 = vmatpush1.bf16.msra.mxu0 0
    %128 = vmatprep.mubr.bf16.mxu0 0
    %129 = vmatmul.mubr.bf16.gmra.mrb[0].mxu0 %v94
    %v130 = vpop.f32.mrb[0].mxu0
    %v131 = vadd.f32 %v78, %v130
    %v132 = vpop.f32.mrb[0].mxu0
    %v133 = vpop.f32.mrb[0].mxu0
    %v134 = vpop.f32.mrb[0].mxu0
    %135 = vdwg.mxu0
    %v136 = vmax.f32 %v131, 0.0
    %v137 = vpack.c.bf16 %v136, %v136
    %v138 = vld [vmem:[#allocation5] sm:$0xf]
    %v139 = vld [vmem:[#allocation5 + $0x4] sm:$0xf]
    %v140 = vld [vmem:[#allocation5 + $0x8] sm:$0xf]
    %v141 = vld [vmem:[#allocation5 + $0xc] sm:$0xf]
    %v142 = vld [vmem:[#allocation5 + $0x10] sm:$0xf]
    %v143 = vld [vmem:[#allocation5 + $0x14] sm:$0xf]
    %v144 = vld [vmem:[#allocation5 + $0x18] sm:$0xf]
    %v145 = vld [vmem:[#allocation5 + $0x1c] sm:$0xf]
    %v146 = vld [vmem:[#allocation5 + $0x20] sm:$0xf]
    %v147 = vld [vmem:[#allocation5 + $0x24] sm:$0xf]
    %v148 = vld [vmem:[#allocation5 + $0x28] sm:$0xf]
    %v149 = vld [vmem:[#allocation5 + $0x2c] sm:$0xf]
    %v150 = vld [vmem:[#allocation5 + $0x30] sm:$0xf]
    %v151 = vld [vmem:[#allocation5 + $0x34] sm:$0xf]
    %v152 = vld [vmem:[#allocation5 + $0x38] sm:$0xf]
    %v153 = vld [vmem:[#allocation5 + $0x3c] sm:$0xf]
    %v154 = vld [vmem:[%s4] sm:$0x1]
    %v156 = vlaneseq
    %v157 = vshrl.u32 %v156, 7
    %v158 = vsub.s32 0, %v157
    %v159 = vrot.slane %v154, %v158
    %v177 = vunpack.c.l.b16 %v138
    %v178 = vunpack.c.l.b16 %v139
    %v179 = vunpack.c.l.b16 %v140
    %v180 = vunpack.c.l.b16 %v141
    %v181 = vunpack.c.l.b16 %v142
    %v182 = vunpack.c.l.b16 %v143
    %v183 = vunpack.c.l.b16 %v144
    %v184 = vunpack.c.l.b16 %v145
    %v185 = vunpack.c.l.b16 %v146
    %v186 = vunpack.c.l.b16 %v147
    %v187 = vunpack.c.l.b16 %v148
    %v188 = vunpack.c.l.b16 %v149
    %v189 = vunpack.c.l.b16 %v150
    %v190 = vunpack.c.l.b16 %v151
    %v191 = vunpack.c.l.b16 %v152
    %v192 = vunpack.c.l.b16 %v153
    %v193 = vpack.c.b16 %v178, %v177
    %v194 = vpack.c.b16 %v180, %v179
    %v195 = vpack.c.b16 %v182, %v181
    %v196 = vpack.c.b16 %v184, %v183
    %v197 = vpack.c.b16 %v186, %v185
    %v198 = vpack.c.b16 %v188, %v187
    %v199 = vpack.c.b16 %v190, %v189
    %v200 = vpack.c.b16 %v192, %v191
    %209 = vmatprep.subr.bf16.mxu0 0
    %210 = vmatpush1.bf16.msra.mxu0 %v193
    %211 = vmatprep.subr.bf16.mxu0 0
    %212 = vmatpush1.bf16.msra.mxu0 %v194
    %213 = vmatprep.subr.bf16.mxu0 0
    %214 = vmatpush1.bf16.msra.mxu0 %v195
    %215 = vmatprep.subr.bf16.mxu0 0
    %216 = vmatpush1.bf16.msra.mxu0 %v196
    %217 = vmatprep.subr.bf16.mxu0 0
    %218 = vmatpush1.bf16.msra.mxu0 %v197
    %219 = vmatprep.subr.bf16.mxu0 0
    %220 = vmatpush1.bf16.msra.mxu0 %v198
    %221 = vmatprep.subr.bf16.mxu0 0
    %222 = vmatpush1.bf16.msra.mxu0 %v199
    %223 = vmatprep.subr.bf16.mxu0 0
    %224 = vmatpush1.bf16.msra.mxu0 %v200
    %225 = vmatprep.subr.bf16.mxu0 0
    %226 = vmatpush1.bf16.msra.mxu0 0
    %227 = vmatprep.subr.bf16.mxu0 0
    %228 = vmatpush1.bf16.msra.mxu0 0
    %229 = vmatprep.subr.bf16.mxu0 0
    %230 = vmatpush1.bf16.msra.mxu0 0
    %231 = vmatprep.subr.bf16.mxu0 0
    %232 = vmatpush1.bf16.msra.mxu0 0
    %233 = vmatprep.subr.bf16.mxu0 0
    %234 = vmatpush1.bf16.msra.mxu0 0
    %235 = vmatprep.subr.bf16.mxu0 0
    %236 = vmatpush1.bf16.msra.mxu0 0
    %237 = vmatprep.subr.bf16.mxu0 0
    %238 = vmatpush1.bf16.msra.mxu0 0
    %239 = vmatprep.subr.bf16.mxu0 0
    %240 = vmatpush1.bf16.msra.mxu0 0
    %241 = vmatprep.mubr.bf16.mxu0 0
    %242 = vmatmul.mubr.bf16.gmra.mrb[0].mxu0 %v137
    %v243 = vpop.f32.mrb[0].mxu0
    %v244 = vadd.f32 %v159, %v243
    %v245 = vpop.f32.mrb[0].mxu0
    %v246 = vpop.f32.mrb[0].mxu0
    %v247 = vpop.f32.mrb[0].mxu0
    %248 = vdwg.mxu0
    %v249 = vmax.f32 %v244, 0.0
    %v250 = vpack.c.bf16 %v249, %v249
    %v251 = vld [vmem:[#allocation7] sm:$0xf]
    %v252 = vld [vmem:[#allocation7 + $0x4] sm:$0xf]
    %v253 = vld [vmem:[#allocation7 + $0x8] sm:$0xf]
    %v254 = vld [vmem:[#allocation7 + $0xc] sm:$0xf]
    %v255 = vld [vmem:[#allocation7 + $0x10] sm:$0xf]
    %v256 = vld [vmem:[#allocation7 + $0x14] sm:$0xf]
    %v257 = vld [vmem:[#allocation7 + $0x18] sm:$0xf]
    %v258 = vld [vmem:[#allocation7 + $0x1c] sm:$0xf]
    %v259 = vld [vmem:[#allocation7 + $0x20] sm:$0xf]
    %v260 = vld [vmem:[#allocation7 + $0x24] sm:$0xf]
    %v261 = vld [vmem:[#allocation7 + $0x28] sm:$0xf]
    %v262 = vld [vmem:[#allocation7 + $0x2c] sm:$0xf]
    %v263 = vld [vmem:[#allocation7 + $0x30] sm:$0xf]
    %v264 = vld [vmem:[#allocation7 + $0x34] sm:$0xf]
    %v265 = vld [vmem:[#allocation7 + $0x38] sm:$0xf]
    %v266 = vld [vmem:[#allocation7 + $0x3c] sm:$0xf]
    %v267 = vld [vmem:[%s6] sm:$0x1]
    %v269 = vlaneseq
    %v270 = vshrl.u32 %v269, 7
    %v271 = vsub.s32 0, %v270
    %v272 = vrot.slane %v267, %v271
    %v290 = vunpack.c.l.b16 %v251
    %v291 = vunpack.c.l.b16 %v252
    %v292 = vunpack.c.l.b16 %v253
    %v293 = vunpack.c.l.b16 %v254
    %v294 = vunpack.c.l.b16 %v255
    %v295 = vunpack.c.l.b16 %v256
    %v296 = vunpack.c.l.b16 %v257
    %v297 = vunpack.c.l.b16 %v258
    %v298 = vunpack.c.l.b16 %v259
    %v299 = vunpack.c.l.b16 %v260
    %v300 = vunpack.c.l.b16 %v261
    %v301 = vunpack.c.l.b16 %v262
    %v302 = vunpack.c.l.b16 %v263
    %v303 = vunpack.c.l.b16 %v264
    %v304 = vunpack.c.l.b16 %v265
    %v305 = vunpack.c.l.b16 %v266
    %v306 = vpack.c.b16 %v291, %v290
    %v307 = vpack.c.b16 %v293, %v292
    %v308 = vpack.c.b16 %v295, %v294
    %v309 = vpack.c.b16 %v297, %v296
    %v310 = vpack.c.b16 %v299, %v298
    %v311 = vpack.c.b16 %v301, %v300
    %v312 = vpack.c.b16 %v303, %v302
    %v313 = vpack.c.b16 %v305, %v304
    %322 = vmatprep.subr.bf16.mxu0 0
    %323 = vmatpush1.bf16.msra.mxu0 %v306
    %324 = vmatprep.subr.bf16.mxu0 0
    %325 = vmatpush1.bf16.msra.mxu0 %v307
    %326 = vmatprep.subr.bf16.mxu0 0
    %327 = vmatpush1.bf16.msra.mxu0 %v308
    %328 = vmatprep.subr.bf16.mxu0 0
    %329 = vmatpush1.bf16.msra.mxu0 %v309
    %330 = vmatprep.subr.bf16.mxu0 0
    %331 = vmatpush1.bf16.msra.mxu0 %v310
    %332 = vmatprep.subr.bf16.mxu0 0
    %333 = vmatpush1.bf16.msra.mxu0 %v311
    %334 = vmatprep.subr.bf16.mxu0 0
    %335 = vmatpush1.bf16.msra.mxu0 %v312
    %336 = vmatprep.subr.bf16.mxu0 0
    %337 = vmatpush1.bf16.msra.mxu0 %v313
    %338 = vmatprep.subr.bf16.mxu0 0
    %339 = vmatpush1.bf16.msra.mxu0 0
    %340 = vmatprep.subr.bf16.mxu0 0
    %341 = vmatpush1.bf16.msra.mxu0 0
    %342 = vmatprep.subr.bf16.mxu0 0
    %343 = vmatpush1.bf16.msra.mxu0 0
    %344 = vmatprep.subr.bf16.mxu0 0
    %345 = vmatpush1.bf16.msra.mxu0 0
    %346 = vmatprep.subr.bf16.mxu0 0
    %347 = vmatpush1.bf16.msra.mxu0 0
    %348 = vmatprep.subr.bf16.mxu0 0
    %349 = vmatpush1.bf16.msra.mxu0 0
    %350 = vmatprep.subr.bf16.mxu0 0
    %351 = vmatpush1.bf16.msra.mxu0 0
    %352 = vmatprep.subr.bf16.mxu0 0
    %353 = vmatpush1.bf16.msra.mxu0 0
    %354 = vmatprep.mubr.bf16.mxu0 0
    %355 = vmatmul.mubr.bf16.gmra.mrb[0].mxu0 %v250
    %v356 = vpop.f32.mrb[0].mxu0
    %v357 = vadd.f32 %v272, %v356
    %v358 = vpop.f32.mrb[0].mxu0
    %v359 = vpop.f32.mrb[0].mxu0
    %v360 = vpop.f32.mrb[0].mxu0
    %361 = vdwg.mxu0
    %362 = vmax.xlane.f32.xlu0 %v357
    %v363 = vpop.xlane.xlu0 %362
    %v364 = vsub.f32 %v357, %v363
    %v365 = vmul.f32 %v364, 1.442695
    %v366 = vpow.pop %v365
    %367 = vadd.xlane.f32.xlu0 %v366
    %v368 = vpop.xlane.xlu0 %367
    %v369 = vrcp.pop %v368
    %v370 = vmul.f32 %v366, %v369
    %v371 = vpack.c.bf16 %v370, %v370
    %372 = vst [vmem:[#allocation8] sm:$0xf] %v371
    // Predicated region
    $region42: #{_lambda_.1} parent=1 // pred_check
      _
    $region43: #{_lambda_.1} parent=1 // pred_check_branch
      %374 = sbr.rel (0) target = $region45
    $region44: #{_lambda_.1} parent=1 // pred_region
      %s376 = ssub.s32 64, 64
      %377 = vsyncadd [#allocation4], %s376
      %s379 = sshll.u32 [#allocation8], 4
      %s380 = int_to_ptr.vmem [resolvable:$true] %s379
      %382 = dma.vmem_to_hbm [thread:$0]  %s380, 64, %s7, [#allocation4]
    $region45: #{_lambda_.1} parent=1 // pred_fallthru
      _
    // Predicated region
    $region46: #{_lambda_.1} parent=1 // pred_check
      _
    $region47: #{_lambda_.1} parent=1 // pred_check_branch
      %384 = sbr.rel (0) target = $region49
    $region48: #{_lambda_.1} parent=1 // pred_region
      %385 = dma.done [#allocation4], 64
    $region49: #{_lambda_.1} parent=1 // pred_fallthru
      _
    %386 = vsyncpa [#allocation3], 1
    %387 = vsyncpa [#allocation6], 1
    %388 = vsyncpa [#allocation4], 1

</llo_original>
